<compile_context>
chip_gen: v5e
topology: v5e:2x2
jax: 0.10.0
libtpu: 0.0.40
codegen_flags: <defaults>
</compile_context>

<pallas_src>
import jax
import jax.numpy as jnp
from jax.experimental import pallas as pl
from jax.experimental.pallas import tpu as pltpu


# ----------------------------- helpers --------------------------------------


def _round_up(x, m):
    return (x + m - 1) // m * m


def _cdiv(a, b):
    return (a + b - 1) // b


def _block_vmem_bytes(shape, itemsize=4):
    """Approximate VMEM footprint of one f32 block ((8,128) tile padding)."""
    if len(shape) == 1:
        return _round_up(shape[0], 128) * itemsize
    lead = 1
    for d in shape[:-2]:
        lead *= d
    return lead * _round_up(shape[-2], 8) * _round_up(shape[-1], 128) * itemsize


def _act_fn(name):
    if name == "relu":
        return lambda x: jnp.maximum(x, 0.0)
    if name == "silu":
        return lambda x: x * jax.nn.sigmoid(x)
    if name == "tanh":
        return jnp.tanh
    raise ValueError(f"unknown activation {name}")


def _act_out_fn(name):
    if name == "id":
        return lambda x: x
    if name == "softplus":
        return jax.nn.softplus
    raise ValueError(f"unknown output activation {name}")


# ------------------------------ kernel --------------------------------------


def make_ffn_kernel(n_hidden, activation="relu", activation_output="id",
                    use_bf16_matmul=False):
    """Kernel body: full Net_FFN forward on one batch tile, feature-major."""
    act = _act_fn(activation)
    act_out = _act_out_fn(activation_output)
    op_dtype = jnp.bfloat16 if use_bf16_matmul else jnp.float32

    def mm(a, b):
        # f32 accumulation regardless of operand dtype.
        return jnp.dot(a.astype(op_dtype), b.astype(op_dtype),
                       preferred_element_type=jnp.float32)

    def kernel(x_ref, w_in_ref, b_in_ref, w_h_ref, b_h_ref,
               w_out_ref, b_out_ref, o_ref):
        # input layer: (W, dim) @ (dim, TB) + (W, 1)
        h = act(mm(w_in_ref[...], x_ref[...]) + b_in_ref[...])
        # hidden layers: n_hidden is small and compile-time -> static unroll.
        for l in range(n_hidden):
            h = act(mm(w_h_ref[l], h) + b_h_ref[l])
        # output layer: (nOut, W) @ (W, TB) + (nOut, 1); lane-dense store.
        o_ref[...] = act_out(mm(w_out_ref[...], h)
                             + b_out_ref[...]).astype(o_ref.dtype)

    return kernel


# ----------------------------- wrapper --------------------------------------


def net_ffn_forward(x, params, activation="relu", activation_output="id",
                    tile_b=8192, use_bf16_matmul=False):
    """x: (B, dim) float32. params: dict from init_params (unpadded, row-major)."""
    w_in, b_in = params["w_in"], params["b_in"]        # (dim, W), (1, W)
    w_h, b_h = params["w_h"], params["b_h"]            # (H, W, W), (H, 1, W)
    w_out, b_out = params["w_out"], params["b_out"]    # (W, nOut), (1, nOut)

    B, dim = x.shape
    W = w_in.shape[1]
    nOut = w_out.shape[1]
    n_hidden = w_h.shape[0]

    # --- feature-major layout: batch on lanes (layout plumbing, tiny tensors) ---
    x_t = x.T                                           # (dim, B)
    w_in_t = w_in.T                                     # (W, dim)
    b_in_t = b_in.T                                     # (W, 1)
    w_h_t = jnp.swapaxes(w_h, 1, 2)                     # (H, W, W), [l] = w_h[l].T
    b_h_t = jnp.swapaxes(b_h, 1, 2)                     # (H, W, 1)
    w_out_t = w_out.T                                   # (nOut, W)
    b_out_t = b_out.T                                   # (nOut, 1)

    # --- pad hidden width to a multiple of 8 sublanes (zero fill: exact) -----
    W_p = max(_round_up(W, 8), 8)
    if W_p != W:
        pw = W_p - W
        w_in_t = jnp.pad(w_in_t, ((0, pw), (0, 0)))
        b_in_t = jnp.pad(b_in_t, ((0, pw), (0, 0)))
        w_h_t = jnp.pad(w_h_t, ((0, 0), (0, pw), (0, pw)))
        b_h_t = jnp.pad(b_h_t, ((0, 0), (0, pw), (0, 0)))
        w_out_t = jnp.pad(w_out_t, ((0, 0), (0, pw)))

    # degenerate n_layers == 1: keep block shapes valid; kernel loop count = 0.
    if n_hidden == 0:
        w_h_t = jnp.zeros((1, W_p, W_p), jnp.float32)
        b_h_t = jnp.zeros((1, W_p, 1), jnp.float32)
    n_h_blk = max(n_hidden, 1)

    # --- per-generation VMEM budget (v7x: 64 MiB/core; v5e/v6e: 128 MiB) -----
    try:
        vmem_cap = int(pltpu.get_tpu_info().vmem_capacity_bytes)
    except Exception:
        kind = ""
        try:
            kind = jax.devices()[0].device_kind.lower()
        except Exception:
            pass
        if "v7" in kind:
            vmem_cap = 64 << 20
        elif ("v5" in kind) or ("v6" in kind):
            vmem_cap = 128 << 20
        else:
            vmem_cap = 64 << 20    # unknown part: stay conservative
    budget = int(0.6 * vmem_cap)

    # --- choose batch tile: lane-dense (x128), large, within the VMEM budget --
    tile_b = max(128, _round_up(min(tile_b, _round_up(B, 128)), 128))
    if B > 128:
        # keep >= 2 grid steps so both TensorCores get work on v7x megacore
        tile_b = min(tile_b, _round_up(_cdiv(B, 2), 128))

    def footprint(tb):
        io = 2 * (_block_vmem_bytes((dim, tb)) + _block_vmem_bytes((nOut, tb)))
        wts = (_block_vmem_bytes((W_p, dim)) + _block_vmem_bytes((W_p, 1))
               + _block_vmem_bytes((n_h_blk, W_p, W_p))
               + _block_vmem_bytes((n_h_blk, W_p, 1))
               + _block_vmem_bytes((nOut, W_p)) + _block_vmem_bytes((nOut, 1)))
        h_live = 2 * _block_vmem_bytes((W_p, tb))
        return io + 2 * wts + h_live

    while tile_b > 128 and footprint(tile_b) > budget:
        tile_b = max(128, _round_up(tile_b // 2, 128))

    # --- pad batch (lane axis) to a multiple of tile_b ------------------------
    B_p = _round_up(B, tile_b)
    if B_p != B:
        x_t = jnp.pad(x_t, ((0, 0), (0, B_p - B)))
    num_tiles = B_p // tile_b

    kernel = make_ffn_kernel(n_hidden, activation, activation_output,
                             use_bf16_matmul)

    const2 = lambda i: (0, 0)
    const3 = lambda i: (0, 0, 0)
    in_specs = [
        pl.BlockSpec((dim, tile_b), lambda i: (0, i)),     # x^T: streamed, lane-dense
        pl.BlockSpec((W_p, dim), const2),                  # weights: VMEM-resident
        pl.BlockSpec((W_p, 1), const2),
        pl.BlockSpec((n_h_blk, W_p, W_p), const3),
        pl.BlockSpec((n_h_blk, W_p, 1), const3),
        pl.BlockSpec((nOut, W_p), const2),
        pl.BlockSpec((nOut, 1), const2),
    ]
    out_specs = pl.BlockSpec((nOut, tile_b), lambda i: (0, i))

    # --- advisory cost estimate for the XLA scheduler -------------------------
    flops = 2 * B_p * (dim * W_p + n_hidden * W_p * W_p + W_p * nOut)
    if activation == "relu":
        transcendentals = 0
    elif activation == "silu":        # sigmoid = exp + reciprocal
        transcendentals = 2 * B_p * W_p * (n_hidden + 1)
    else:                             # tanh
        transcendentals = B_p * W_p * (n_hidden + 1)
    if activation_output == "softplus":
        transcendentals += 2 * B_p * nOut
    bytes_accessed = 4 * (B_p * dim + B_p * nOut
                          + W_p * dim + W_p
                          + n_hidden * (W_p * W_p + W_p)
                          + nOut * W_p + nOut)

    vmem_limit = min(budget, max(2 * footprint(tile_b), 16 << 20))

    out_t = pl.pallas_call(
        kernel,
        out_shape=jax.ShapeDtypeStruct((nOut, B_p), jnp.float32),
        grid=(num_tiles,),
        in_specs=in_specs,
        out_specs=out_specs,
        compiler_params=pltpu.CompilerParams(
            dimension_semantics=("parallel",),   # megacore sharding on v7x
            vmem_limit_bytes=int(vmem_limit),
        ),
        cost_estimate=pl.CostEstimate(
            flops=flops,
            transcendentals=transcendentals,
            bytes_accessed=bytes_accessed),
    )(x_t, w_in_t, b_in_t, w_h_t, b_h_t, w_out_t, b_out_t)

    # back to PyTorch's (B, nOut) layout; drop the batch padding.
    return out_t.T[:B]


# -------------------------- params & reference ------------------------------


def init_params(key, dim, nOut, n_layers, vNetWidth):
    """Deterministic parameter init (PyTorch-Linear-like uniform fan-in init)."""
    n_hidden = n_layers - 1
    keys = jax.random.split(key, 6)

    def uinit(k, shape, fan_in):
        bound = 1.0 / jnp.sqrt(jnp.float32(fan_in))
        return jax.random.uniform(k, shape, jnp.float32, -bound, bound)

    return {
        "w_in": uinit(keys[0], (dim, vNetWidth), dim),
        "b_in": uinit(keys[1], (1, vNetWidth), dim),
        "w_h": uinit(keys[2], (n_hidden, vNetWidth, vNetWidth), vNetWidth),
        "b_h": uinit(keys[3], (n_hidden, 1, vNetWidth), vNetWidth),
        "w_out": uinit(keys[4], (vNetWidth, nOut), vNetWidth),
        "b_out": uinit(keys[5], (1, nOut), vNetWidth),
    }


def reference_forward(x, params, activation="relu", activation_output="id"):
    """Plain-JAX reference of Net_FFN forward."""
    act = _act_fn(activation)
    act_out = _act_out_fn(activation_output)
    h = act(x @ params["w_in"] + params["b_in"])
    for l in range(params["w_h"].shape[0]):
        h = act(h @ params["w_h"][l] + params["b_h"][l])
    return act_out(h @ params["w_out"] + params["b_out"])


# -------------------------------- main ---------------------------------------


if __name__ == "__main__":
    # Shapes consistent with the module: dim=4, nOut=2, n_layers=3, width=32
    dim, nOut, n_layers, vNetWidth = 4, 2, 3, 32

    key = jax.random.PRNGKey(0)
    pkey, xkey1, xkey2 = jax.random.split(key, 3)
    params = init_params(pkey, dim, nOut, n_layers, vNetWidth)

    # Small batch (single grid step), relu / identity.
    x_small = jax.random.normal(xkey1, (8, dim), jnp.float32)
    out_small = jax.block_until_ready(net_ffn_forward(x_small, params))
    ref_small = reference_forward(x_small, params)
    assert out_small.shape == (8, nOut)
    assert jnp.allclose(out_small, ref_small, atol=1e-5, rtol=1e-5), \
        "small-batch mismatch vs reference"

    # Larger batch: batch padding, >= 2 grid steps (v7x megacore), resident weights.
    x_big = jax.random.normal(xkey2, (1000, dim), jnp.float32)
    out_big = jax.block_until_ready(net_ffn_forward(x_big, params))
    ref_big = reference_forward(x_big, params)
    assert out_big.shape == (1000, nOut)
    assert jnp.allclose(out_big, ref_big, atol=1e-4, rtol=1e-4), \
        "multi-tile mismatch vs reference"

    # Exercise the tanh / softplus code paths at a small shape.
    out_ts = jax.block_until_ready(
        net_ffn_forward(x_small, params, activation="tanh",
                        activation_output="softplus"))
    ref_ts = reference_forward(x_small, params, "tanh", "softplus")
    assert jnp.allclose(out_ts, ref_ts, atol=1e-5, rtol=1e-5), \
        "tanh/softplus mismatch vs reference"

    print("KERNEL_OK")
</pallas_src>

<mosaic_0001>
module attributes {stable_mosaic.version = 11 : i64} {
  func.func @kernel(%arg0: i32, %arg1: memref<4x128xf32, #tpu.memory_space<vmem>>, %arg2: memref<32x4xf32, #tpu.memory_space<vmem>>, %arg3: memref<32x1xf32, #tpu.memory_space<vmem>>, %arg4: memref<2x32x32xf32, #tpu.memory_space<vmem>>, %arg5: memref<2x32x1xf32, #tpu.memory_space<vmem>>, %arg6: memref<2x32xf32, #tpu.memory_space<vmem>>, %arg7: memref<2x1xf32, #tpu.memory_space<vmem>>, %arg8: memref<2x128xf32, #tpu.memory_space<vmem>>) attributes {dimension_semantics = [#tpu.dimension_semantics<parallel>], iteration_bounds = array<i64: 1>, scalar_prefetch = 0 : i64, scratch_operands = 0 : i64, tpu.core_type = #tpu.core_type<tc>, window_params = [{transform_indices = @transform_0, window_bounds = array<i64: 4, 128>}, {pipeline_mode = #tpu.pipeline_mode<synchronous>, transform_indices = @transform_1, window_bounds = array<i64: 32, 4>}, {pipeline_mode = #tpu.pipeline_mode<synchronous>, transform_indices = @transform_2, window_bounds = array<i64: 32, 1>}, {pipeline_mode = #tpu.pipeline_mode<synchronous>, transform_indices = @transform_3, window_bounds = array<i64: 2, 32, 32>}, {pipeline_mode = #tpu.pipeline_mode<synchronous>, transform_indices = @transform_4, window_bounds = array<i64: 2, 32, 1>}, {pipeline_mode = #tpu.pipeline_mode<synchronous>, transform_indices = @transform_5, window_bounds = array<i64: 2, 32>}, {pipeline_mode = #tpu.pipeline_mode<synchronous>, transform_indices = @transform_6, window_bounds = array<i64: 2, 1>}, {transform_indices = @transform_7, window_bounds = array<i64: 2, 128>}]} {
    %c0 = arith.constant 0 : index
    %c0_0 = arith.constant 0 : index
    %0 = vector.load %arg2[%c0, %c0_0] : memref<32x4xf32, #tpu.memory_space<vmem>>, vector<32x4xf32>
    %c0_1 = arith.constant 0 : index
    %c0_2 = arith.constant 0 : index
    %1 = vector.load %arg1[%c0_1, %c0_2] : memref<4x128xf32, #tpu.memory_space<vmem>>, vector<4x128xf32>
    %cst = arith.constant dense<0.000000e+00> : vector<32x128xf32>
    %2 = tpu.matmul %0, %1, %cst {dimension_numbers = #tpu.dot_dimension_numbers<[1], [0], [0], [1], [0, 0, 1, 1], [], []>} : vector<32x4xf32>, vector<4x128xf32>, vector<32x128xf32> -> vector<32x128xf32>
    %c0_3 = arith.constant 0 : index
    %c0_4 = arith.constant 0 : index
    %3 = vector.load %arg3[%c0_3, %c0_4] : memref<32x1xf32, #tpu.memory_space<vmem>>, vector<32x1xf32>
    %4 = vector.broadcast %3 : vector<32x1xf32> to vector<32x128xf32>
    %5 = arith.addf %2, %4 : vector<32x128xf32>
    %cst_5 = arith.constant 0.000000e+00 : f32
    %6 = vector.broadcast %cst_5 : f32 to vector<32x128xf32>
    %7 = arith.maximumf %5, %6 : vector<32x128xf32>
    %c0_6 = arith.constant 0 : index
    %c0_7 = arith.constant 0 : index
    %c0_8 = arith.constant 0 : index
    %8 = vector.load %arg4[%c0_6, %c0_7, %c0_8] : memref<2x32x32xf32, #tpu.memory_space<vmem>>, vector<1x32x32xf32>
    %9 = vector.shape_cast %8 : vector<1x32x32xf32> to vector<32x32xf32>
    %cst_9 = arith.constant dense<0.000000e+00> : vector<32x128xf32>
    %10 = tpu.matmul %9, %7, %cst_9 {dimension_numbers = #tpu.dot_dimension_numbers<[1], [0], [0], [1], [0, 0, 1, 1], [], []>} : vector<32x32xf32>, vector<32x128xf32>, vector<32x128xf32> -> vector<32x128xf32>
    %c0_10 = arith.constant 0 : index
    %c0_11 = arith.constant 0 : index
    %c0_12 = arith.constant 0 : index
    %11 = vector.load %arg5[%c0_10, %c0_11, %c0_12] : memref<2x32x1xf32, #tpu.memory_space<vmem>>, vector<1x32x1xf32>
    %12 = vector.shape_cast %11 : vector<1x32x1xf32> to vector<32x1xf32>
    %13 = vector.broadcast %12 : vector<32x1xf32> to vector<32x128xf32>
    %14 = arith.addf %10, %13 : vector<32x128xf32>
    %cst_13 = arith.constant 0.000000e+00 : f32
    %15 = vector.broadcast %cst_13 : f32 to vector<32x128xf32>
    %16 = arith.maximumf %14, %15 : vector<32x128xf32>
    %c1 = arith.constant 1 : index
    %c0_14 = arith.constant 0 : index
    %c0_15 = arith.constant 0 : index
    %17 = vector.load %arg4[%c1, %c0_14, %c0_15] : memref<2x32x32xf32, #tpu.memory_space<vmem>>, vector<1x32x32xf32>
    %18 = vector.shape_cast %17 : vector<1x32x32xf32> to vector<32x32xf32>
    %cst_16 = arith.constant dense<0.000000e+00> : vector<32x128xf32>
    %19 = tpu.matmul %18, %16, %cst_16 {dimension_numbers = #tpu.dot_dimension_numbers<[1], [0], [0], [1], [0, 0, 1, 1], [], []>} : vector<32x32xf32>, vector<32x128xf32>, vector<32x128xf32> -> vector<32x128xf32>
    %c1_17 = arith.constant 1 : index
    %c0_18 = arith.constant 0 : index
    %c0_19 = arith.constant 0 : index
    %20 = vector.load %arg5[%c1_17, %c0_18, %c0_19] : memref<2x32x1xf32, #tpu.memory_space<vmem>>, vector<1x32x1xf32>
    %21 = vector.shape_cast %20 : vector<1x32x1xf32> to vector<32x1xf32>
    %22 = vector.broadcast %21 : vector<32x1xf32> to vector<32x128xf32>
    %23 = arith.addf %19, %22 : vector<32x128xf32>
    %cst_20 = arith.constant 0.000000e+00 : f32
    %24 = vector.broadcast %cst_20 : f32 to vector<32x128xf32>
    %25 = arith.maximumf %23, %24 : vector<32x128xf32>
    %c0_21 = arith.constant 0 : index
    %c0_22 = arith.constant 0 : index
    %26 = vector.load %arg6[%c0_21, %c0_22] : memref<2x32xf32, #tpu.memory_space<vmem>>, vector<2x32xf32>
    %cst_23 = arith.constant dense<0.000000e+00> : vector<2x128xf32>
    %27 = tpu.matmul %26, %25, %cst_23 {dimension_numbers = #tpu.dot_dimension_numbers<[1], [0], [0], [1], [0, 0, 1, 1], [], []>} : vector<2x32xf32>, vector<32x128xf32>, vector<2x128xf32> -> vector<2x128xf32>
    %c0_24 = arith.constant 0 : index
    %c0_25 = arith.constant 0 : index
    %28 = vector.load %arg7[%c0_24, %c0_25] : memref<2x1xf32, #tpu.memory_space<vmem>>, vector<2x1xf32>
    %29 = vector.broadcast %28 : vector<2x1xf32> to vector<2x128xf32>
    %30 = arith.addf %27, %29 : vector<2x128xf32>
    %c0_26 = arith.constant 0 : index
    %c0_27 = arith.constant 0 : index
    %31 = vector.load %arg8[%c0_26, %c0_27] : memref<2x128xf32, #tpu.memory_space<vmem>>, vector<2x128xf32>
    tpu.vector_store %arg8[%c0_26, %c0_27], %30 {strides = array<i32>} : memref<2x128xf32, #tpu.memory_space<vmem>>, vector<2x128xf32>,
    return
  }
  func.func @transform_0(%arg0: i32) -> (i32, i32) {
    %c0_i32 = arith.constant 0 : i32
    %c0_i32_0 = arith.constant 0 : i32
    return %c0_i32, %arg0 : i32, i32
  }
  func.func @transform_1(%arg0: i32) -> (i32, i32) {
    %c0_i32 = arith.constant 0 : i32
    %c0_i32_0 = arith.constant 0 : i32
    %c0_i32_1 = arith.constant 0 : i32
    return %c0_i32, %c0_i32_0 : i32, i32
  }
  func.func @transform_2(%arg0: i32) -> (i32, i32) {
    %c0_i32 = arith.constant 0 : i32
    %c0_i32_0 = arith.constant 0 : i32
    %c0_i32_1 = arith.constant 0 : i32
    return %c0_i32, %c0_i32_0 : i32, i32
  }
  func.func @transform_3(%arg0: i32) -> (i32, i32, i32) {
    %c0_i32 = arith.constant 0 : i32
    %c0_i32_0 = arith.constant 0 : i32
    %c0_i32_1 = arith.constant 0 : i32
    %c0_i32_2 = arith.constant 0 : i32
    return %c0_i32, %c0_i32_0, %c0_i32_1 : i32, i32, i32
  }
  func.func @transform_4(%arg0: i32) -> (i32, i32, i32) {
    %c0_i32 = arith.constant 0 : i32
    %c0_i32_0 = arith.constant 0 : i32
    %c0_i32_1 = arith.constant 0 : i32
    %c0_i32_2 = arith.constant 0 : i32
    return %c0_i32, %c0_i32_0, %c0_i32_1 : i32, i32, i32
  }
  func.func @transform_5(%arg0: i32) -> (i32, i32) {
    %c0_i32 = arith.constant 0 : i32
    %c0_i32_0 = arith.constant 0 : i32
    %c0_i32_1 = arith.constant 0 : i32
    return %c0_i32, %c0_i32_0 : i32, i32
  }
  func.func @transform_6(%arg0: i32) -> (i32, i32) {
    %c0_i32 = arith.constant 0 : i32
    %c0_i32_0 = arith.constant 0 : i32
    %c0_i32_1 = arith.constant 0 : i32
    return %c0_i32, %c0_i32_0 : i32, i32
  }
  func.func @transform_7(%arg0: i32) -> (i32, i32) {
    %c0_i32 = arith.constant 0 : i32
    %c0_i32_0 = arith.constant 0 : i32
    return %c0_i32, %arg0 : i32, i32
  }
}

</mosaic_0001>

<llo_original>
// kernel: tpu_custom_call.1
$region0: #{tpu_custom_call.1}
  #allocation0 [shape = 'u32[]', space=smem, size = 0x4, offset = 0x4, fixed_abs, tag = 'smem constant byte address 0x4 - core index']
  #allocation1 [shape = 'u32[72,128]{1,0:T(1,128)}', space=vmem, size = 0x9000, scoped, tag = 'internal scratch']
  %s0 = inlined_call_operand.vmem [shape: f32[4,128], index: 0, kind: input, shape index: {}]
  %s1 = inlined_call_operand.vmem [shape: f32[32,4], index: 1, kind: input, shape index: {}]
  %s2 = inlined_call_operand.vmem [shape: f32[32,1], index: 2, kind: input, shape index: {}]
  %s3 = inlined_call_operand.vmem [shape: f32[2,32,32], index: 3, kind: input, shape index: {}]
  %s4 = inlined_call_operand.vmem [shape: f32[2,32,1], index: 4, kind: input, shape index: {}]
  %s5 = inlined_call_operand.vmem [shape: f32[2,32], index: 5, kind: input, shape index: {}]
  %s6 = inlined_call_operand.vmem [shape: f32[2,1], index: 6, kind: input, shape index: {}]
  %s7 = inlined_call_operand.hbm [shape: f32[2,128], index: 7, kind: output, shape index: {}]
  %s8 = sld [smem:[#allocation0]]
  $region38: #{tpu_custom_call.1} parent=0
    _
  %s10 = ssub.s32 1, %s8
  %s11 = scalar_select 0, %s10, %s8
  $region1: #{tpu_custom_call.1} parent=0
    #allocation2 [shape = 'u8[1024]{0}', space=vmem, size = 0x400, scoped, tag = 'output window, operand 0, single buffered']
    #allocation3 [shape = 's32[1]{0}', space=sflag, size = 0x4, scoped, tag = 'scoped memory for tpu_custom_call.1']
    %12 = vsyncpa [#allocation3], 0
    // Predicated region
    $region2: #{tpu_custom_call.1} parent=1 // pred_check
      _
    $region3: #{tpu_custom_call.1} parent=1 // pred_check_branch
      %14 = sbr.rel (0) target = $region5
    $region4: #{tpu_custom_call.1} parent=1 // pred_region
      _
    $region5: #{tpu_custom_call.1} parent=1 // pred_fallthru
      _
    // Predicated region
    $region6: #{tpu_custom_call.1} parent=1 // pred_check
      _
    $region7: #{tpu_custom_call.1} parent=1 // pred_check_branch
      %16 = sbr.rel (0) target = $region9
    $region8: #{tpu_custom_call.1} parent=1 // pred_region
      _
    $region9: #{tpu_custom_call.1} parent=1 // pred_fallthru
      _
    // Predicated region
    $region10: #{tpu_custom_call.1} parent=1 // pred_check
      _
    $region11: #{tpu_custom_call.1} parent=1 // pred_check_branch
      %18 = sbr.rel (0) target = $region13
    $region12: #{tpu_custom_call.1} parent=1 // pred_region
      _
    $region13: #{tpu_custom_call.1} parent=1 // pred_fallthru
      _
    // Predicated region
    $region14: #{tpu_custom_call.1} parent=1 // pred_check
      _
    $region15: #{tpu_custom_call.1} parent=1 // pred_check_branch
      %20 = sbr.rel (0) target = $region17
    $region16: #{tpu_custom_call.1} parent=1 // pred_region
      _
    $region17: #{tpu_custom_call.1} parent=1 // pred_fallthru
      _
    // Predicated region
    $region18: #{tpu_custom_call.1} parent=1 // pred_check
      _
    $region19: #{tpu_custom_call.1} parent=1 // pred_check_branch
      %22 = sbr.rel (0) target = $region21
    $region20: #{tpu_custom_call.1} parent=1 // pred_region
      _
    $region21: #{tpu_custom_call.1} parent=1 // pred_fallthru
      _
    // Predicated region
    $region22: #{tpu_custom_call.1} parent=1 // pred_check
      _
    $region23: #{tpu_custom_call.1} parent=1 // pred_check_branch
      %24 = sbr.rel (0) target = $region25
    $region24: #{tpu_custom_call.1} parent=1 // pred_region
      _
    $region25: #{tpu_custom_call.1} parent=1 // pred_fallthru
      _
    // Predicated region
    $region26: #{tpu_custom_call.1} parent=1 // pred_check
      _
    $region27: #{tpu_custom_call.1} parent=1 // pred_check_branch
      %26 = sbr.rel (0) target = $region29
    $region28: #{tpu_custom_call.1} parent=1 // pred_region
      _
    $region29: #{tpu_custom_call.1} parent=1 // pred_fallthru
      _
    %v27 = vld [vmem:[%s1] sm:$0xff]
    %v28 = vld [vmem:[%s1 + $0x8] sm:$0xff]
    %v29 = vld [vmem:[%s1 + $0x10] sm:$0xff]
    %v30 = vld [vmem:[%s1 + $0x18] sm:$0xff]
    %v31 = vld [vmem:[%s0] sm:$0xf]
    %v32 = vld [vmem:[%s2] sm:$0xff]
    %v33 = vld [vmem:[%s2 + $0x8] sm:$0xff]
    %v34 = vld [vmem:[%s2 + $0x10] sm:$0xff]
    %v35 = vld [vmem:[%s2 + $0x18] sm:$0xff]
    %37 = vset.pattern.permute.xlu0 0
    %38 = vperm.xlu0 %37, %v32
    %v39 = vpop.permute.xlu0 %38
    %42 = vset.pattern.permute.xlu0 0
    %43 = vperm.xlu0 %42, %v33
    %v44 = vpop.permute.xlu0 %43
    %47 = vset.pattern.permute.xlu0 0
    %48 = vperm.xlu0 %47, %v34
    %v49 = vpop.permute.xlu0 %48
    %52 = vset.pattern.permute.xlu0 0
    %53 = vperm.xlu0 %52, %v35
    %v54 = vpop.permute.xlu0 %53
    %vm56 = vcmask 31744
    %v58 = vsel %vm56, %v27, 0
    %v61 = vsel %vm56, %v28, 0
    %v64 = vsel %vm56, %v29, 0
    %v67 = vsel %vm56, %v30, 0
    %vm69 = vcmask 1043456
    %v71 = vsel %vm69, %v31, 0
    %73 = vmatpush.msra.mxu0 0.0
    %74 = vmatpush.msra.mxu0 0.0
    %75 = vmatpush.msra.mxu0 0.0
    %76 = vmatpush.msra.mxu0 0.0
    %77 = vmatpush.msra.mxu0 0.0
    %78 = vmatpush.msra.mxu0 0.0
    %79 = vmatpush.msra.mxu0 0.0
    %80 = vmatpush.msra.mxu0 0.0
    %81 = vmatpush.msra.mxu0 0.0
    %82 = vmatpush.msra.mxu0 0.0
    %83 = vmatpush.msra.mxu0 0.0
    %84 = vmatpush.msra.mxu0 0.0
    %85 = vmatpush.msra.mxu0 0.0
    %86 = vmatpush.msra.mxu0 0.0
    %87 = vmatpush.msra.mxu0 0.0
    %88 = vmatpush.msra.mxu0 %v71
    %89 = vmatmul.f32.gmra.mxu0 %v58
    %v90 = vpop.f32.mrf.mxu0
    %v91 = vadd.f32 %v39, %v90
    %92 = vmatmul.f32.gmra.mxu0 %v61
    %v93 = vpop.f32.mrf.mxu0
    %v94 = vadd.f32 %v44, %v93
    %95 = vmatmul.f32.gmra.mxu0 %v64
    %v96 = vpop.f32.mrf.mxu0
    %v97 = vadd.f32 %v49, %v96
    %98 = vmatmul.f32.gmra.mxu0 %v67
    %v99 = vpop.f32.mrf.mxu0
    %v100 = vadd.f32 %v54, %v99
    %101 = vdwg.mxu0
    %v102 = vmax.f32 %v91, 0.0
    %v103 = vmax.f32 %v94, 0.0
    %v104 = vmax.f32 %v97, 0.0
    %v105 = vmax.f32 %v100, 0.0
    %v106 = vld [vmem:[%s3] sm:$0xff]
    %v107 = vld [vmem:[%s3 + $0x8] sm:$0xff]
    %v108 = vld [vmem:[%s3 + $0x10] sm:$0xff]
    %v109 = vld [vmem:[%s3 + $0x18] sm:$0xff]
    %v110 = vld [vmem:[%s4] sm:$0xff]
    %v111 = vld [vmem:[%s4 + $0x8] sm:$0xff]
    %v112 = vld [vmem:[%s4 + $0x10] sm:$0xff]
    %v113 = vld [vmem:[%s4 + $0x18] sm:$0xff]
    %115 = vset.pattern.permute.xlu0 0
    %116 = vperm.xlu0 %115, %v110
    %v117 = vpop.permute.xlu0 %116
    %120 = vset.pattern.permute.xlu0 0
    %121 = vperm.xlu0 %120, %v111
    %v122 = vpop.permute.xlu0 %121
    %125 = vset.pattern.permute.xlu0 0
    %126 = vperm.xlu0 %125, %v112
    %v127 = vpop.permute.xlu0 %126
    %130 = vset.pattern.permute.xlu0 0
    %131 = vperm.xlu0 %130, %v113
    %v132 = vpop.permute.xlu0 %131
    %vm134 = vcmask 261120
    %v136 = vsel %vm134, %v106, 0
    %v139 = vsel %vm134, %v107, 0
    %v142 = vsel %vm134, %v108, 0
    %v145 = vsel %vm134, %v109, 0
    %147 = vmatpush.msra.mxu0 0.0
    %148 = vmatpush.msra.mxu0 0.0
    %149 = vmatpush.msra.mxu0 0.0
    %150 = vmatpush.msra.mxu0 0.0
    %151 = vmatpush.msra.mxu0 0.0
    %152 = vmatpush.msra.mxu0 0.0
    %153 = vmatpush.msra.mxu0 0.0
    %154 = vmatpush.msra.mxu0 0.0
    %155 = vmatpush.msra.mxu0 0.0
    %156 = vmatpush.msra.mxu0 0.0
    %157 = vmatpush.msra.mxu0 0.0
    %158 = vmatpush.msra.mxu0 0.0
    %159 = vmatpush.msra.mxu0 %v105
    %160 = vmatpush.msra.mxu0 %v104
    %161 = vmatpush.msra.mxu0 %v103
    %162 = vmatpush.msra.mxu0 %v102
    %163 = vmatmul.f32.gmra.mxu0 %v136
    %v164 = vpop.f32.mrf.mxu0
    %v165 = vadd.f32 %v117, %v164
    %166 = vmatmul.f32.gmra.mxu0 %v139
    %v167 = vpop.f32.mrf.mxu0
    %v168 = vadd.f32 %v122, %v167
    %169 = vmatmul.f32.gmra.mxu0 %v142
    %v170 = vpop.f32.mrf.mxu0
    %v171 = vadd.f32 %v127, %v170
    %172 = vmatmul.f32.gmra.mxu0 %v145
    %v173 = vpop.f32.mrf.mxu0
    %v174 = vadd.f32 %v132, %v173
    %175 = vdwg.mxu0
    %v176 = vmax.f32 %v165, 0.0
    %v177 = vmax.f32 %v168, 0.0
    %v178 = vmax.f32 %v171, 0.0
    %v179 = vmax.f32 %v174, 0.0
    %s180 = scalar_lea.vmem %s3, 32
    %v181 = vld [vmem:[%s180] sm:$0xff]
    %v182 = vld [vmem:[%s180 + $0x8] sm:$0xff]
    %v183 = vld [vmem:[%s180 + $0x10] sm:$0xff]
    %v184 = vld [vmem:[%s180 + $0x18] sm:$0xff]
    %s185 = scalar_lea.vmem %s4, 32
    %v186 = vld [vmem:[%s185] sm:$0xff]
    %v187 = vld [vmem:[%s185 + $0x8] sm:$0xff]
    %v188 = vld [vmem:[%s185 + $0x10] sm:$0xff]
    %v189 = vld [vmem:[%s185 + $0x18] sm:$0xff]
    %191 = vset.pattern.permute.xlu0 0
    %192 = vperm.xlu0 %191, %v186
    %v193 = vpop.permute.xlu0 %192
    %196 = vset.pattern.permute.xlu0 0
    %197 = vperm.xlu0 %196, %v187
    %v198 = vpop.permute.xlu0 %197
    %201 = vset.pattern.permute.xlu0 0
    %202 = vperm.xlu0 %201, %v188
    %v203 = vpop.permute.xlu0 %202
    %206 = vset.pattern.permute.xlu0 0
    %207 = vperm.xlu0 %206, %v189
    %v208 = vpop.permute.xlu0 %207
    %v211 = vsel %vm134, %v181, 0
    %v214 = vsel %vm134, %v182, 0
    %v217 = vsel %vm134, %v183, 0
    %v220 = vsel %vm134, %v184, 0
    %222 = vmatpush.msra.mxu0 0.0
    %223 = vmatpush.msra.mxu0 0.0
    %224 = vmatpush.msra.mxu0 0.0
    %225 = vmatpush.msra.mxu0 0.0
    %226 = vmatpush.msra.mxu0 0.0
    %227 = vmatpush.msra.mxu0 0.0
    %228 = vmatpush.msra.mxu0 0.0
    %229 = vmatpush.msra.mxu0 0.0
    %230 = vmatpush.msra.mxu0 0.0
    %231 = vmatpush.msra.mxu0 0.0
    %232 = vmatpush.msra.mxu0 0.0
    %233 = vmatpush.msra.mxu0 0.0
    %234 = vmatpush.msra.mxu0 %v179
    %235 = vmatpush.msra.mxu0 %v178
    %236 = vmatpush.msra.mxu0 %v177
    %237 = vmatpush.msra.mxu0 %v176
    %238 = vmatmul.f32.gmra.mxu0 %v211
    %v239 = vpop.f32.mrf.mxu0
    %v240 = vadd.f32 %v193, %v239
    %241 = vmatmul.f32.gmra.mxu0 %v214
    %v242 = vpop.f32.mrf.mxu0
    %v243 = vadd.f32 %v198, %v242
    %244 = vmatmul.f32.gmra.mxu0 %v217
    %v245 = vpop.f32.mrf.mxu0
    %v246 = vadd.f32 %v203, %v245
    %247 = vmatmul.f32.gmra.mxu0 %v220
    %v248 = vpop.f32.mrf.mxu0
    %v249 = vadd.f32 %v208, %v248
    %250 = vdwg.mxu0
    %v251 = vmax.f32 %v240, 0.0
    %v252 = vmax.f32 %v243, 0.0
    %v253 = vmax.f32 %v246, 0.0
    %v254 = vmax.f32 %v249, 0.0
    %v255 = vld [vmem:[%s5] sm:$0x3]
    %v256 = vld [vmem:[%s6] sm:$0x3]
    %258 = vset.pattern.permute.xlu0 0
    %259 = vperm.xlu0 %258, %v256
    %v260 = vpop.permute.xlu0 %259
    %v263 = vsel %vm134, %v255, 0
    %265 = vmatpush.msra.mxu0 0.0
    %266 = vmatpush.msra.mxu0 0.0
    %267 = vmatpush.msra.mxu0 0.0
    %268 = vmatpush.msra.mxu0 0.0
    %269 = vmatpush.msra.mxu0 0.0
    %270 = vmatpush.msra.mxu0 0.0
    %271 = vmatpush.msra.mxu0 0.0
    %272 = vmatpush.msra.mxu0 0.0
    %273 = vmatpush.msra.mxu0 0.0
    %274 = vmatpush.msra.mxu0 0.0
    %275 = vmatpush.msra.mxu0 0.0
    %276 = vmatpush.msra.mxu0 0.0
    %277 = vmatpush.msra.mxu0 %v254
    %278 = vmatpush.msra.mxu0 %v253
    %279 = vmatpush.msra.mxu0 %v252
    %280 = vmatpush.msra.mxu0 %v251
    %281 = vmatmul.f32.gmra.mxu0 %v263
    %v282 = vpop.f32.mrf.mxu0
    %v283 = vadd.f32 %v260, %v282
    %284 = vdwg.mxu0
    %285 = vst [vmem:[#allocation2] sm:$0x3] %v283
    // Predicated region
    $region30: #{tpu_custom_call.1} parent=1 // pred_check
      _
    $region31: #{tpu_custom_call.1} parent=1 // pred_check_branch
      %287 = sbr.rel (0) target = $region33
    $region32: #{tpu_custom_call.1} parent=1 // pred_region
      %289 = vsyncadd [#allocation3], 0
      %s291 = sshll.u32 [#allocation2], 4
      %s292 = int_to_ptr.vmem [resolvable:$true] %s291
      %s293 = sshll.u32 %s7, 4
      %s294 = int_to_ptr.hbm [resolvable:$true] %s293
      %296 = dma.vmem_to_hbm [thread:$0]  %s292, 32, %s294, [#allocation3]
    $region33: #{tpu_custom_call.1} parent=1 // pred_fallthru
      _
    // Predicated region
    $region34: #{tpu_custom_call.1} parent=1 // pred_check
      _
    $region35: #{tpu_custom_call.1} parent=1 // pred_check_branch
      %298 = sbr.rel (0) target = $region37
    $region36: #{tpu_custom_call.1} parent=1 // pred_region
      %300 = dma.done [#allocation3], 32
    $region37: #{tpu_custom_call.1} parent=1 // pred_fallthru
      _
    %301 = vsyncpa [#allocation3], 1

</llo_original>
